<compile_context>
chip_gen: v5e
topology: v5e:2x2
jax: 0.10.0
libtpu: 0.0.40
codegen_flags: <defaults>
</compile_context>

<pallas_src>
import jax
import jax.numpy as jnp
from jax.experimental import pallas as pl
from jax.experimental.pallas import tpu as pltpu

N_OBSERVATIONS = 4   # CartPole-v1 observation size
N_ACTIONS = 2        # CartPole-v1 action count
HIDDEN = 128

OUT_COLS = 8         # n_actions padded 2 -> 8 (stores only 8 lanes, not 128)
TILE_B = 2048        # batch tile for large batches (~4-5 MiB VMEM)


def dqn_kernel(x_ref, w1_ref, b1_ref, w2_ref, b2_ref, w3_ref, b3_ref, out_ref):
    # All three matmuls hit the MXU with bf16 operands / f32 accumulation;
    # bias add + ReLU stay in f32 on the VPU.
    x = x_ref[...].astype(jnp.bfloat16)                               # (T, 4)
    h1 = jnp.dot(x, w1_ref[...], preferred_element_type=jnp.float32) + b1_ref[...]
    h1 = jnp.maximum(h1, 0.0).astype(jnp.bfloat16)                    # (T, 128)
    h2 = jnp.dot(h1, w2_ref[...], preferred_element_type=jnp.float32) + b2_ref[...]
    h2 = jnp.maximum(h2, 0.0).astype(jnp.bfloat16)                    # (T, 128)
    q = jnp.dot(h2, w3_ref[...], preferred_element_type=jnp.float32) + b3_ref[...]
    out_ref[...] = q.astype(out_ref.dtype)                            # (T, 8)


def _choose_tile(batch, tile_b):
    if batch <= 8:
        # Block equals the full array dims -> always a legal BlockSpec,
        # single grid step, no padding of any kind.
        return batch
    # >= 2 grid programs (v7x megacore), tile a multiple of 8 sublanes,
    # capped at TILE_B.  Last grid block may be ragged (handled by Pallas:
    # OOB reads are row-local garbage that we never consume, OOB writes are
    # masked); the wrapper slices back to [:batch].
    half = (batch + 1) // 2
    return min(tile_b, ((half + 7) // 8) * 8)


def dqn_forward(x, kernel_params, *, tile_b=TILE_B):
    """x: (batch, N_OBSERVATIONS) f32 -> (batch, N_ACTIONS) f32 Q-values."""
    w1, b1, w2, b2, w3, b3 = kernel_params
    batch = x.shape[0]
    tile = _choose_tile(batch, tile_b)
    grid = pl.cdiv(batch, tile)

    flops = 2 * batch * (N_OBSERVATIONS * HIDDEN + HIDDEN * HIDDEN + HIDDEN * OUT_COLS)
    bytes_accessed = (
        batch * N_OBSERVATIONS * 4            # x read (f32)
        + batch * OUT_COLS * 4                # q write (f32)
        + (w1.size + w2.size + w3.size) * 2   # bf16 weights
        + (b1.size + b2.size + b3.size) * 4   # f32 biases
    )

    out = pl.pallas_call(
        dqn_kernel,
        out_shape=jax.ShapeDtypeStruct((batch, OUT_COLS), jnp.float32),
        grid=(grid,),
        in_specs=[
            pl.BlockSpec((tile, N_OBSERVATIONS), lambda i: (i, 0)),   # x, batch-tiled
            pl.BlockSpec((N_OBSERVATIONS, HIDDEN), lambda i: (0, 0)), # w1 (resident)
            pl.BlockSpec((1, HIDDEN), lambda i: (0, 0)),              # b1
            pl.BlockSpec((HIDDEN, HIDDEN), lambda i: (0, 0)),         # w2
            pl.BlockSpec((1, HIDDEN), lambda i: (0, 0)),              # b2
            pl.BlockSpec((HIDDEN, OUT_COLS), lambda i: (0, 0)),       # w3 (2->8 pad)
            pl.BlockSpec((1, OUT_COLS), lambda i: (0, 0)),            # b3 (2->8 pad)
        ],
        out_specs=pl.BlockSpec((tile, OUT_COLS), lambda i: (i, 0)),
        compiler_params=pltpu.CompilerParams(
            dimension_semantics=("parallel",),   # megacore sharding on v7x
        ),
        cost_estimate=pl.CostEstimate(
            flops=flops, transcendentals=0, bytes_accessed=bytes_accessed),
    )(x, w1, b1, w2, b2, w3, b3)
    return out[:, :N_ACTIONS]


def init_params_f32(key):
    """f32 params in (in, out) layout, mirroring nn.Linear's U(-1/sqrt(fan_in), ...)."""
    ks = jax.random.split(key, 6)

    def linear(kw, kb, fan_in, fan_out):
        bound = 1.0 / jnp.sqrt(jnp.float32(fan_in))
        w = jax.random.uniform(kw, (fan_in, fan_out), jnp.float32, -bound, bound)
        b = jax.random.uniform(kb, (fan_out,), jnp.float32, -bound, bound)
        return w, b

    w1, b1 = linear(ks[0], ks[1], N_OBSERVATIONS, HIDDEN)
    w2, b2 = linear(ks[2], ks[3], HIDDEN, HIDDEN)
    w3, b3 = linear(ks[4], ks[5], HIDDEN, N_ACTIONS)
    return (w1, b1, w2, b2, w3, b3)


def pack_params(params_f32):
    """Cast/pad for the kernel: bf16 weights (w3 cols zero-padded 2->8), f32 (1,out) biases."""
    w1, b1, w2, b2, w3, b3 = params_f32
    w3p = jnp.zeros((HIDDEN, OUT_COLS), jnp.float32).at[:, :N_ACTIONS].set(w3)
    b3p = jnp.zeros((OUT_COLS,), jnp.float32).at[:N_ACTIONS].set(b3)
    return (
        w1.astype(jnp.bfloat16),  b1.reshape(1, HIDDEN).astype(jnp.float32),
        w2.astype(jnp.bfloat16),  b2.reshape(1, HIDDEN).astype(jnp.float32),
        w3p.astype(jnp.bfloat16), b3p.reshape(1, OUT_COLS).astype(jnp.float32),
    )


def dqn_reference_f32(x, params_f32):
    """Exact f32 forward of the PyTorch module (loose semantic check)."""
    w1, b1, w2, b2, w3, b3 = params_f32
    h1 = jnp.maximum(x @ w1 + b1, 0.0)
    h2 = jnp.maximum(h1 @ w2 + b2, 0.0)
    return h2 @ w3 + b3


def dqn_reference_mixed(x, params_f32):
    """Reference matching the kernel's mixed precision (bf16 operands, f32 acc)."""
    w1, b1, w2, b2, w3, b3 = params_f32
    bf = jnp.bfloat16
    h1 = jnp.dot(x.astype(bf), w1.astype(bf), preferred_element_type=jnp.float32) + b1
    h1 = jnp.maximum(h1, 0.0)
    h2 = jnp.dot(h1.astype(bf), w2.astype(bf), preferred_element_type=jnp.float32) + b2
    h2 = jnp.maximum(h2, 0.0)
    return jnp.dot(h2.astype(bf), w3.astype(bf), preferred_element_type=jnp.float32) + b3


if __name__ == "__main__":
    key = jax.random.PRNGKey(0)
    k_x, k_x2, k_p = jax.random.split(key, 3)

    params_f32 = init_params_f32(k_p)
    kernel_params = pack_params(params_f32)

    # Small batch: single grid step, block == full array dims, no padding.
    batch = 2
    x = jax.random.normal(k_x, (batch, N_OBSERVATIONS), jnp.float32)
    q_values = jax.block_until_ready(dqn_forward(x, kernel_params))
    assert q_values.shape == (batch, N_ACTIONS)

    # Tight check against a reference that mimics the kernel's mixed precision.
    q_mixed = dqn_reference_mixed(x, params_f32)
    assert jnp.allclose(q_values, q_mixed, atol=1e-4, rtol=1e-4), (q_values, q_mixed)

    # Loose check against the exact f32 PyTorch-equivalent forward
    # (difference comes only from bf16 rounding of weights/activations).
    q_f32 = dqn_reference_f32(x, params_f32)
    assert jnp.allclose(q_values, q_f32, atol=5e-2, rtol=5e-2), (q_values, q_f32)

    # Larger batch: 2-program grid with a ragged last block (exercises the
    # cdiv-grid / megacore path used for real training batches).
    batch2 = 300
    x2 = jax.random.normal(k_x2, (batch2, N_OBSERVATIONS), jnp.float32)
    q2 = jax.block_until_ready(dqn_forward(x2, kernel_params))
    assert q2.shape == (batch2, N_ACTIONS)
    q2_mixed = dqn_reference_mixed(x2, params_f32)
    assert jnp.allclose(q2, q2_mixed, atol=1e-4, rtol=1e-4), "large-batch mismatch"

    print("KERNEL_OK")
</pallas_src>

<mosaic_0001>
module attributes {stable_mosaic.version = 11 : i64} {
  func.func @dqn_kernel(%arg0: i32, %arg1: memref<2x4xf32, #tpu.memory_space<vmem>>, %arg2: memref<4x128xbf16, #tpu.memory_space<vmem>>, %arg3: memref<1x128xf32, #tpu.memory_space<vmem>>, %arg4: memref<128x128xbf16, #tpu.memory_space<vmem>>, %arg5: memref<1x128xf32, #tpu.memory_space<vmem>>, %arg6: memref<128x8xbf16, #tpu.memory_space<vmem>>, %arg7: memref<1x8xf32, #tpu.memory_space<vmem>>, %arg8: memref<2x8xf32, #tpu.memory_space<vmem>>) attributes {dimension_semantics = [#tpu.dimension_semantics<parallel>], iteration_bounds = array<i64: 1>, scalar_prefetch = 0 : i64, scratch_operands = 0 : i64, tpu.core_type = #tpu.core_type<tc>, window_params = [{transform_indices = @transform_0, window_bounds = array<i64: 2, 4>}, {pipeline_mode = #tpu.pipeline_mode<synchronous>, transform_indices = @transform_1, window_bounds = array<i64: 4, 128>}, {pipeline_mode = #tpu.pipeline_mode<synchronous>, transform_indices = @transform_2, window_bounds = array<i64: 1, 128>}, {pipeline_mode = #tpu.pipeline_mode<synchronous>, transform_indices = @transform_3, window_bounds = array<i64: 128, 128>}, {pipeline_mode = #tpu.pipeline_mode<synchronous>, transform_indices = @transform_4, window_bounds = array<i64: 1, 128>}, {pipeline_mode = #tpu.pipeline_mode<synchronous>, transform_indices = @transform_5, window_bounds = array<i64: 128, 8>}, {pipeline_mode = #tpu.pipeline_mode<synchronous>, transform_indices = @transform_6, window_bounds = array<i64: 1, 8>}, {transform_indices = @transform_7, window_bounds = array<i64: 2, 8>}]} {
    %c0 = arith.constant 0 : index
    %c0_0 = arith.constant 0 : index
    %0 = vector.load %arg1[%c0, %c0_0] : memref<2x4xf32, #tpu.memory_space<vmem>>, vector<2x4xf32>
    %1 = arith.truncf %0 : vector<2x4xf32> to vector<2x4xbf16>
    %c0_1 = arith.constant 0 : index
    %c0_2 = arith.constant 0 : index
    %2 = vector.load %arg2[%c0_1, %c0_2] : memref<4x128xbf16, #tpu.memory_space<vmem>>, vector<4x128xbf16>
    %cst = arith.constant dense<0.000000e+00> : vector<2x128xf32>
    %3 = tpu.matmul %1, %2, %cst {dimension_numbers = #tpu.dot_dimension_numbers<[1], [0], [0], [1], [0, 0, 1, 1], [], []>} : vector<2x4xbf16>, vector<4x128xbf16>, vector<2x128xf32> -> vector<2x128xf32>
    %c0_3 = arith.constant 0 : index
    %c0_4 = arith.constant 0 : index
    %4 = vector.load %arg3[%c0_3, %c0_4] : memref<1x128xf32, #tpu.memory_space<vmem>>, vector<1x128xf32>
    %5 = vector.broadcast %4 : vector<1x128xf32> to vector<2x128xf32>
    %6 = arith.addf %3, %5 : vector<2x128xf32>
    %cst_5 = arith.constant 0.000000e+00 : f32
    %7 = vector.broadcast %cst_5 : f32 to vector<2x128xf32>
    %8 = arith.maximumf %6, %7 : vector<2x128xf32>
    %9 = arith.truncf %8 : vector<2x128xf32> to vector<2x128xbf16>
    %c0_6 = arith.constant 0 : index
    %c0_7 = arith.constant 0 : index
    %10 = vector.load %arg4[%c0_6, %c0_7] : memref<128x128xbf16, #tpu.memory_space<vmem>>, vector<128x128xbf16>
    %cst_8 = arith.constant dense<0.000000e+00> : vector<2x128xf32>
    %11 = tpu.matmul %9, %10, %cst_8 {dimension_numbers = #tpu.dot_dimension_numbers<[1], [0], [0], [1], [0, 0, 1, 1], [], []>} : vector<2x128xbf16>, vector<128x128xbf16>, vector<2x128xf32> -> vector<2x128xf32>
    %c0_9 = arith.constant 0 : index
    %c0_10 = arith.constant 0 : index
    %12 = vector.load %arg5[%c0_9, %c0_10] : memref<1x128xf32, #tpu.memory_space<vmem>>, vector<1x128xf32>
    %13 = vector.broadcast %12 : vector<1x128xf32> to vector<2x128xf32>
    %14 = arith.addf %11, %13 : vector<2x128xf32>
    %cst_11 = arith.constant 0.000000e+00 : f32
    %15 = vector.broadcast %cst_11 : f32 to vector<2x128xf32>
    %16 = arith.maximumf %14, %15 : vector<2x128xf32>
    %17 = arith.truncf %16 : vector<2x128xf32> to vector<2x128xbf16>
    %c0_12 = arith.constant 0 : index
    %c0_13 = arith.constant 0 : index
    %18 = vector.load %arg6[%c0_12, %c0_13] : memref<128x8xbf16, #tpu.memory_space<vmem>>, vector<128x8xbf16>
    %cst_14 = arith.constant dense<0.000000e+00> : vector<2x8xf32>
    %19 = tpu.matmul %17, %18, %cst_14 {dimension_numbers = #tpu.dot_dimension_numbers<[1], [0], [0], [1], [0, 0, 1, 1], [], []>} : vector<2x128xbf16>, vector<128x8xbf16>, vector<2x8xf32> -> vector<2x8xf32>
    %c0_15 = arith.constant 0 : index
    %c0_16 = arith.constant 0 : index
    %20 = vector.load %arg7[%c0_15, %c0_16] : memref<1x8xf32, #tpu.memory_space<vmem>>, vector<1x8xf32>
    %21 = vector.broadcast %20 : vector<1x8xf32> to vector<2x8xf32>
    %22 = arith.addf %19, %21 : vector<2x8xf32>
    %c0_17 = arith.constant 0 : index
    %c0_18 = arith.constant 0 : index
    %23 = vector.load %arg8[%c0_17, %c0_18] : memref<2x8xf32, #tpu.memory_space<vmem>>, vector<2x8xf32>
    tpu.vector_store %arg8[%c0_17, %c0_18], %22 {strides = array<i32>} : memref<2x8xf32, #tpu.memory_space<vmem>>, vector<2x8xf32>,
    return
  }
  func.func @transform_0(%arg0: i32) -> (i32, i32) {
    %c0_i32 = arith.constant 0 : i32
    %c0_i32_0 = arith.constant 0 : i32
    return %arg0, %c0_i32 : i32, i32
  }
  func.func @transform_1(%arg0: i32) -> (i32, i32) {
    %c0_i32 = arith.constant 0 : i32
    %c0_i32_0 = arith.constant 0 : i32
    %c0_i32_1 = arith.constant 0 : i32
    return %c0_i32, %c0_i32_0 : i32, i32
  }
  func.func @transform_2(%arg0: i32) -> (i32, i32) {
    %c0_i32 = arith.constant 0 : i32
    %c0_i32_0 = arith.constant 0 : i32
    %c0_i32_1 = arith.constant 0 : i32
    return %c0_i32, %c0_i32_0 : i32, i32
  }
  func.func @transform_3(%arg0: i32) -> (i32, i32) {
    %c0_i32 = arith.constant 0 : i32
    %c0_i32_0 = arith.constant 0 : i32
    %c0_i32_1 = arith.constant 0 : i32
    return %c0_i32, %c0_i32_0 : i32, i32
  }
  func.func @transform_4(%arg0: i32) -> (i32, i32) {
    %c0_i32 = arith.constant 0 : i32
    %c0_i32_0 = arith.constant 0 : i32
    %c0_i32_1 = arith.constant 0 : i32
    return %c0_i32, %c0_i32_0 : i32, i32
  }
  func.func @transform_5(%arg0: i32) -> (i32, i32) {
    %c0_i32 = arith.constant 0 : i32
    %c0_i32_0 = arith.constant 0 : i32
    %c0_i32_1 = arith.constant 0 : i32
    return %c0_i32, %c0_i32_0 : i32, i32
  }
  func.func @transform_6(%arg0: i32) -> (i32, i32) {
    %c0_i32 = arith.constant 0 : i32
    %c0_i32_0 = arith.constant 0 : i32
    %c0_i32_1 = arith.constant 0 : i32
    return %c0_i32, %c0_i32_0 : i32, i32
  }
  func.func @transform_7(%arg0: i32) -> (i32, i32) {
    %c0_i32 = arith.constant 0 : i32
    %c0_i32_0 = arith.constant 0 : i32
    return %arg0, %c0_i32 : i32, i32
  }
}

</mosaic_0001>

<llo_original>
// kernel: tpu_custom_call.1
$region0: #{tpu_custom_call.1}
  #allocation0 [shape = 'u32[]', space=smem, size = 0x4, offset = 0x4, fixed_abs, tag = 'smem constant byte address 0x4 - core index']
  #allocation1 [shape = 'u32[72,128]{1,0:T(1,128)}', space=vmem, size = 0x9000, scoped, tag = 'internal scratch']
  %s0 = inlined_call_operand.vmem [shape: f32[2,4], index: 0, kind: input, shape index: {}]
  %s1 = inlined_call_operand.vmem [shape: bf16[4,128], index: 1, kind: input, shape index: {}]
  %s2 = inlined_call_operand.hbm [shape: f32[1,128], index: 2, kind: input, shape index: {}]
  %s3 = inlined_call_operand.vmem [shape: bf16[128,128], index: 3, kind: input, shape index: {}]
  %s4 = inlined_call_operand.hbm [shape: f32[1,128], index: 4, kind: input, shape index: {}]
  %s5 = inlined_call_operand.vmem [shape: bf16[128,8], index: 5, kind: input, shape index: {}]
  %s6 = inlined_call_operand.vmem [shape: f32[1,8], index: 6, kind: input, shape index: {}]
  %s7 = inlined_call_operand.hbm [shape: f32[2,8], index: 7, kind: output, shape index: {}]
  %s8 = sld [smem:[#allocation0]]
  $region46: #{tpu_custom_call.1} parent=0
    _
  %s10 = ssub.s32 1, %s8
  %s11 = scalar_select 0, %s10, %s8
  $region1: #{tpu_custom_call.1} parent=0
    #allocation2 [shape = 'u8[512]{0}', space=vmem, size = 0x400, scoped, tag = 'input window, operand 2, single buffered']
    #allocation3 [shape = 's32[1]{0}', space=sflag, size = 0x4, scoped, tag = 'scoped memory for tpu_custom_call.1']
    #allocation4 [shape = 's32[1]{0}', space=sflag, size = 0x4, scoped, tag = 'scoped memory for tpu_custom_call.1']
    #allocation5 [shape = 'u8[512]{0}', space=vmem, size = 0x400, scoped, tag = 'input window, operand 4, single buffered']
    #allocation6 [shape = 's32[1]{0}', space=sflag, size = 0x4, scoped, tag = 'scoped memory for tpu_custom_call.1']
    #allocation7 [shape = 'u8[1024]{0}', space=vmem, size = 0x400, scoped, tag = 'output window, operand 0, single buffered']
    %12 = vsyncpa [#allocation3], 0
    %13 = vsyncpa [#allocation6], 0
    %14 = vsyncpa [#allocation4], 0
    // Predicated region
    $region2: #{tpu_custom_call.1} parent=1 // pred_check
      _
    $region3: #{tpu_custom_call.1} parent=1 // pred_check_branch
      %16 = sbr.rel (0) target = $region5
    $region4: #{tpu_custom_call.1} parent=1 // pred_region
      _
    $region5: #{tpu_custom_call.1} parent=1 // pred_fallthru
      _
    // Predicated region
    $region6: #{tpu_custom_call.1} parent=1 // pred_check
      _
    $region7: #{tpu_custom_call.1} parent=1 // pred_check_branch
      %18 = sbr.rel (0) target = $region9
    $region8: #{tpu_custom_call.1} parent=1 // pred_region
      _
    $region9: #{tpu_custom_call.1} parent=1 // pred_fallthru
      _
    // Predicated region
    $region10: #{tpu_custom_call.1} parent=1 // pred_check
      _
    $region11: #{tpu_custom_call.1} parent=1 // pred_check_branch
      %20 = sbr.rel (0) target = $region13
    $region12: #{tpu_custom_call.1} parent=1 // pred_region
      %22 = vsyncadd [#allocation3], 0
      %s24 = sshll.u32 %s2, 4
      %s25 = int_to_ptr.hbm [resolvable:$true] %s24
      %s26 = sshll.u32 [#allocation2], 4
      %s27 = int_to_ptr.vmem [resolvable:$true] %s26
      %29 = dma.hbm_to_vmem [thread:$0]  %s25, 16, %s27, [#allocation3]
    $region13: #{tpu_custom_call.1} parent=1 // pred_fallthru
      _
    // Predicated region
    $region14: #{tpu_custom_call.1} parent=1 // pred_check
      _
    $region15: #{tpu_custom_call.1} parent=1 // pred_check_branch
      %31 = sbr.rel (0) target = $region17
    $region16: #{tpu_custom_call.1} parent=1 // pred_region
      _
    $region17: #{tpu_custom_call.1} parent=1 // pred_fallthru
      _
    // Predicated region
    $region18: #{tpu_custom_call.1} parent=1 // pred_check
      _
    $region19: #{tpu_custom_call.1} parent=1 // pred_check_branch
      %33 = sbr.rel (0) target = $region21
    $region20: #{tpu_custom_call.1} parent=1 // pred_region
      %35 = vsyncadd [#allocation6], 0
      %s37 = sshll.u32 %s4, 4
      %s38 = int_to_ptr.hbm [resolvable:$true] %s37
      %s39 = sshll.u32 [#allocation5], 4
      %s40 = int_to_ptr.vmem [resolvable:$true] %s39
      %42 = dma.hbm_to_vmem [thread:$0]  %s38, 16, %s40, [#allocation6]
    $region21: #{tpu_custom_call.1} parent=1 // pred_fallthru
      _
    // Predicated region
    $region22: #{tpu_custom_call.1} parent=1 // pred_check
      _
    $region23: #{tpu_custom_call.1} parent=1 // pred_check_branch
      %44 = sbr.rel (0) target = $region25
    $region24: #{tpu_custom_call.1} parent=1 // pred_region
      _
    $region25: #{tpu_custom_call.1} parent=1 // pred_fallthru
      _
    // Predicated region
    $region26: #{tpu_custom_call.1} parent=1 // pred_check
      _
    $region27: #{tpu_custom_call.1} parent=1 // pred_check_branch
      %46 = sbr.rel (0) target = $region29
    $region28: #{tpu_custom_call.1} parent=1 // pred_region
      _
    $region29: #{tpu_custom_call.1} parent=1 // pred_fallthru
      _
    // Predicated region
    $region30: #{tpu_custom_call.1} parent=1 // pred_check
      _
    $region31: #{tpu_custom_call.1} parent=1 // pred_check_branch
      %48 = sbr.rel (0) target = $region33
    $region32: #{tpu_custom_call.1} parent=1 // pred_region
      %50 = dma.done [#allocation3], 16
    $region33: #{tpu_custom_call.1} parent=1 // pred_fallthru
      _
    // Predicated region
    $region34: #{tpu_custom_call.1} parent=1 // pred_check
      _
    $region35: #{tpu_custom_call.1} parent=1 // pred_check_branch
      %52 = sbr.rel (0) target = $region37
    $region36: #{tpu_custom_call.1} parent=1 // pred_region
      %54 = dma.done [#allocation6], 16
    $region37: #{tpu_custom_call.1} parent=1 // pred_fallthru
      _
    %v56 = vld [vmem:[%s0] sm:$0x3]
    %v57 = vpack.c.bf16 %v56, %v56
    %v58 = vld [vmem:[%s1] sm:$0x3]
    %v59 = vld [vmem:[#allocation2] sm:$0x1]
    %v61 = vperm.slane %v59, 0
    %vm63 = vcmask 31744
    %v65 = vsel %vm63, %v57, 0
    %vm67 = vcmask 1041408
    %v69 = vsel %vm67, %v58, 0
    %71 = vmatpush.bf16.msra.mxu0 0
    %72 = vmatpush.bf16.msra.mxu0 0
    %73 = vmatpush.bf16.msra.mxu0 0
    %74 = vmatpush.bf16.msra.mxu0 0
    %75 = vmatpush.bf16.msra.mxu0 0
    %76 = vmatpush.bf16.msra.mxu0 0
    %77 = vmatpush.bf16.msra.mxu0 0
    %78 = vmatpush.bf16.msra.mxu0 %v69
    %79 = vmatmul.bf16.gmra.mxu0 %v65
    %v80 = vpop.f32.mrf.mxu0
    %v81 = vadd.f32 %v61, %v80
    %v82 = vpop.f32.mrf.mxu0
    %83 = vdwg.mxu0
    %v84 = vmax.f32 %v81, 0.0
    %v85 = vpack.c.bf16 %v84, %v84
    %v86 = vld [vmem:[%s3] sm:$0xf]
    %v87 = vld [vmem:[%s3 + $0x4] sm:$0xf]
    %v88 = vld [vmem:[%s3 + $0x8] sm:$0xf]
    %v89 = vld [vmem:[%s3 + $0xc] sm:$0xf]
    %v90 = vld [vmem:[%s3 + $0x10] sm:$0xf]
    %v91 = vld [vmem:[%s3 + $0x14] sm:$0xf]
    %v92 = vld [vmem:[%s3 + $0x18] sm:$0xf]
    %v93 = vld [vmem:[%s3 + $0x1c] sm:$0xf]
    %v94 = vld [vmem:[%s3 + $0x20] sm:$0xf]
    %v95 = vld [vmem:[%s3 + $0x24] sm:$0xf]
    %v96 = vld [vmem:[%s3 + $0x28] sm:$0xf]
    %v97 = vld [vmem:[%s3 + $0x2c] sm:$0xf]
    %v98 = vld [vmem:[%s3 + $0x30] sm:$0xf]
    %v99 = vld [vmem:[%s3 + $0x34] sm:$0xf]
    %v100 = vld [vmem:[%s3 + $0x38] sm:$0xf]
    %v101 = vld [vmem:[%s3 + $0x3c] sm:$0xf]
    %v102 = vld [vmem:[#allocation5] sm:$0x1]
    %v104 = vperm.slane %v102, 0
    %v122 = vunpack.c.l.b16 %v86
    %v123 = vunpack.c.l.b16 %v87
    %v124 = vunpack.c.l.b16 %v88
    %v125 = vunpack.c.l.b16 %v89
    %v126 = vunpack.c.l.b16 %v90
    %v127 = vunpack.c.l.b16 %v91
    %v128 = vunpack.c.l.b16 %v92
    %v129 = vunpack.c.l.b16 %v93
    %v130 = vunpack.c.l.b16 %v94
    %v131 = vunpack.c.l.b16 %v95
    %v132 = vunpack.c.l.b16 %v96
    %v133 = vunpack.c.l.b16 %v97
    %v134 = vunpack.c.l.b16 %v98
    %v135 = vunpack.c.l.b16 %v99
    %v136 = vunpack.c.l.b16 %v100
    %v137 = vunpack.c.l.b16 %v101
    %v138 = vpack.c.b16 %v123, %v122
    %v139 = vpack.c.b16 %v125, %v124
    %v140 = vpack.c.b16 %v127, %v126
    %v141 = vpack.c.b16 %v129, %v128
    %v142 = vpack.c.b16 %v131, %v130
    %v143 = vpack.c.b16 %v133, %v132
    %v144 = vpack.c.b16 %v135, %v134
    %v145 = vpack.c.b16 %v137, %v136
    %154 = vmatpush.bf16.msra.mxu0 %v145
    %155 = vmatpush.bf16.msra.mxu0 %v144
    %156 = vmatpush.bf16.msra.mxu0 %v143
    %157 = vmatpush.bf16.msra.mxu0 %v142
    %158 = vmatpush.bf16.msra.mxu0 %v141
    %159 = vmatpush.bf16.msra.mxu0 %v140
    %160 = vmatpush.bf16.msra.mxu0 %v139
    %161 = vmatpush.bf16.msra.mxu0 %v138
    %162 = vmatmul.bf16.gmra.mxu0 %v85
    %v163 = vpop.f32.mrf.mxu0
    %v164 = vadd.f32 %v104, %v163
    %v165 = vpop.f32.mrf.mxu0
    %166 = vdwg.mxu0
    %v167 = vmax.f32 %v164, 0.0
    %v168 = vpack.c.bf16 %v167, %v167
    %v169 = vld [vmem:[%s5] sm:$0xf]
    %v170 = vld [vmem:[%s5 + $0x4] sm:$0xf]
    %v171 = vld [vmem:[%s5 + $0x8] sm:$0xf]
    %v172 = vld [vmem:[%s5 + $0xc] sm:$0xf]
    %v173 = vld [vmem:[%s5 + $0x10] sm:$0xf]
    %v174 = vld [vmem:[%s5 + $0x14] sm:$0xf]
    %v175 = vld [vmem:[%s5 + $0x18] sm:$0xf]
    %v176 = vld [vmem:[%s5 + $0x1c] sm:$0xf]
    %v177 = vld [vmem:[%s5 + $0x20] sm:$0xf]
    %v178 = vld [vmem:[%s5 + $0x24] sm:$0xf]
    %v179 = vld [vmem:[%s5 + $0x28] sm:$0xf]
    %v180 = vld [vmem:[%s5 + $0x2c] sm:$0xf]
    %v181 = vld [vmem:[%s5 + $0x30] sm:$0xf]
    %v182 = vld [vmem:[%s5 + $0x34] sm:$0xf]
    %v183 = vld [vmem:[%s5 + $0x38] sm:$0xf]
    %v184 = vld [vmem:[%s5 + $0x3c] sm:$0xf]
    %v185 = vld [vmem:[%s6] sm:$0x1]
    %v187 = vperm.slane %v185, 0
    %v205 = vunpack.c.l.b16 %v169
    %v206 = vunpack.c.l.b16 %v170
    %v207 = vunpack.c.l.b16 %v171
    %v208 = vunpack.c.l.b16 %v172
    %v209 = vunpack.c.l.b16 %v173
    %v210 = vunpack.c.l.b16 %v174
    %v211 = vunpack.c.l.b16 %v175
    %v212 = vunpack.c.l.b16 %v176
    %v213 = vunpack.c.l.b16 %v177
    %v214 = vunpack.c.l.b16 %v178
    %v215 = vunpack.c.l.b16 %v179
    %v216 = vunpack.c.l.b16 %v180
    %v217 = vunpack.c.l.b16 %v181
    %v218 = vunpack.c.l.b16 %v182
    %v219 = vunpack.c.l.b16 %v183
    %v220 = vunpack.c.l.b16 %v184
    %v221 = vpack.c.b16 %v206, %v205
    %v222 = vpack.c.b16 %v208, %v207
    %v223 = vpack.c.b16 %v210, %v209
    %v224 = vpack.c.b16 %v212, %v211
    %v225 = vpack.c.b16 %v214, %v213
    %v226 = vpack.c.b16 %v216, %v215
    %v227 = vpack.c.b16 %v218, %v217
    %v228 = vpack.c.b16 %v220, %v219
    %237 = vmatpush.bf16.msra.mxu0 %v228
    %238 = vmatpush.bf16.msra.mxu0 %v227
    %239 = vmatpush.bf16.msra.mxu0 %v226
    %240 = vmatpush.bf16.msra.mxu0 %v225
    %241 = vmatpush.bf16.msra.mxu0 %v224
    %242 = vmatpush.bf16.msra.mxu0 %v223
    %243 = vmatpush.bf16.msra.mxu0 %v222
    %244 = vmatpush.bf16.msra.mxu0 %v221
    %245 = vmatmul.bf16.gmra.mxu0 %v168
    %v246 = vpop.f32.mrf.mxu0
    %v247 = vadd.f32 %v187, %v246
    %v248 = vpop.f32.mrf.mxu0
    %249 = vdwg.mxu0
    %vm250 = vcmask 58368
    %251 = vst.msk [vmem:[#allocation7] sm:$0x3] %vm250, %v247
    // Predicated region
    $region38: #{tpu_custom_call.1} parent=1 // pred_check
      _
    $region39: #{tpu_custom_call.1} parent=1 // pred_check_branch
      %253 = sbr.rel (0) target = $region41
    $region40: #{tpu_custom_call.1} parent=1 // pred_region
      %255 = vsyncadd [#allocation4], 0
      %s257 = sshll.u32 [#allocation7], 4
      %s258 = int_to_ptr.vmem [resolvable:$true] %s257
      %s259 = sshll.u32 %s7, 4
      %s260 = int_to_ptr.hbm [resolvable:$true] %s259
      %262 = dma.vmem_to_hbm [thread:$0]  %s258, 32, %s260, [#allocation4]
    $region41: #{tpu_custom_call.1} parent=1 // pred_fallthru
      _
    // Predicated region
    $region42: #{tpu_custom_call.1} parent=1 // pred_check
      _
    $region43: #{tpu_custom_call.1} parent=1 // pred_check_branch
      %264 = sbr.rel (0) target = $region45
    $region44: #{tpu_custom_call.1} parent=1 // pred_region
      %266 = dma.done [#allocation4], 32
    $region45: #{tpu_custom_call.1} parent=1 // pred_fallthru
      _
    %267 = vsyncpa [#allocation3], 1
    %268 = vsyncpa [#allocation6], 1
    %269 = vsyncpa [#allocation4], 1

</llo_original>
